<compile_context>
chip_gen: v7x
topology: tpu7x:2x2x1
jax: 0.10.0
libtpu: 0.0.40
codegen_flags: <defaults>
</compile_context>

<pallas_src>
import functools
from math import sqrt, ceil

import jax
import jax.numpy as jnp
from jax.experimental import pallas as pl
from jax.experimental.pallas import tpu as pltpu

EPS = 1e-5  # nn.InstanceNorm2d default


def _round_up(x, m):
    return ((x + m - 1) // m) * m


# --------------------------------------------------------------------------
# Fused single-pass kernel: one row block holds the full (padded) spatial dim.
# --------------------------------------------------------------------------
def _adain_fused_kernel(gb_ref, x_ref, o_ref, *, hw_true, masked):
    # gb_ref: (TR, 2) f32, column 0 = gamma, column 1 = beta
    # x_ref, o_ref: (TR, HW_pad) storage dtype
    x = x_ref[...].astype(jnp.float32)
    inv_hw = 1.0 / hw_true

    mean = jnp.sum(x, axis=-1, keepdims=True) * inv_hw          # zeros in pad: exact
    d = x - mean
    if masked:  # padded lanes must not contribute to the centered variance
        lane = jax.lax.broadcasted_iota(jnp.int32, x.shape, 1)
        d = jnp.where(lane < hw_true, d, 0.0)
    var = jnp.sum(d * d, axis=-1, keepdims=True) * inv_hw

    a = gb_ref[:, 0:1] * jax.lax.rsqrt(var + EPS)                # scale
    b = gb_ref[:, 1:2] - mean * a                                # shift
    o_ref[...] = (x * a + b).astype(o_ref.dtype)


# --------------------------------------------------------------------------
# Spatially tiled fallback (large HW): stats pass + apply pass.
# --------------------------------------------------------------------------
def _adain_stats_kernel(gb_ref, x_ref, ab_ref, acc_ref, *, hw_true):
    h = pl.program_id(1)

    @pl.when(h == 0)
    def _init():
        acc_ref[...] = jnp.zeros_like(acc_ref)

    x = x_ref[...].astype(jnp.float32)                           # (TR, THW)
    acc_ref[:, 0:1] += jnp.sum(x, axis=-1, keepdims=True)
    acc_ref[:, 1:2] += jnp.sum(x * x, axis=-1, keepdims=True)

    @pl.when(h == pl.num_programs(1) - 1)
    def _finalize():
        inv_hw = 1.0 / hw_true
        mean = acc_ref[:, 0:1] * inv_hw
        var = jnp.maximum(acc_ref[:, 1:2] * inv_hw - mean * mean, 0.0)
        a = gb_ref[:, 0:1] * jax.lax.rsqrt(var + EPS)
        ab_ref[:, 0:1] = a
        ab_ref[:, 1:2] = gb_ref[:, 1:2] - mean * a


def _adain_apply_kernel(ab_ref, x_ref, o_ref):
    x = x_ref[...].astype(jnp.float32)
    o_ref[...] = (x * ab_ref[:, 0:1] + ab_ref[:, 1:2]).astype(o_ref.dtype)


# --------------------------------------------------------------------------
# Tiling helpers
# --------------------------------------------------------------------------
def _pick_row_tile(nr_pad, sublane_mult, hw_pad, budget_elems):
    """Largest sublane-aligned divisor of nr_pad whose (TR, HW_pad) block fits.

    Prefers a choice that yields >= 2 grid tiles (megacore). Returns None if
    even the minimal row block exceeds the budget (-> spatial tiling needed).
    """
    cands = [t for t in range(sublane_mult, nr_pad + 1, sublane_mult)
             if nr_pad % t == 0]
    fitting = [t for t in cands if t * hw_pad <= budget_elems]
    if not fitting:
        return None
    multi = [t for t in fitting if nr_pad // t >= 2]
    pool = multi if multi else fitting
    return max(pool)


# --------------------------------------------------------------------------
# Wrapper
# --------------------------------------------------------------------------
def adain_pallas(x, style, weight, bias, *, max_block_elems=512 * 1024):
    """x: (N, C, H, W); style: (N, S); weight: (2C, S) raw EqualLR; bias: (2C,).

    max_block_elems caps each x block at that many f32-equivalent elements
    (default 512K = 2 MiB of f32 temporaries) so double-buffered in+out plus
    the f32 upcast stays inside the scoped-VMEM default on v5e/v6e/v7x.
    """
    N, C, H, W = x.shape
    S = style.shape[1]
    HW = H * W
    NR = N * C

    # --- EqualLR style linear in XLA (w_eff = weight * sqrt(2 / fan_in)) ---
    scale = sqrt(2.0 / S)
    w_eff = (weight.astype(jnp.float32) * scale).T               # (S, 2C)
    y = style.astype(jnp.float32) @ w_eff + bias.astype(jnp.float32)
    gamma = y[:, :C]                                             # (N, C)
    beta = y[:, C:]                                              # (N, C)
    gb = jnp.stack([gamma, beta], axis=-1).reshape(NR, 2)        # (N*C, 2) f32

    itemsize = jnp.dtype(x.dtype).itemsize
    sublane_mult = 8 * max(1, 4 // itemsize)                     # 8 f32 / 16 bf16
    nr_pad = _round_up(NR, sublane_mult)
    hw_pad = _round_up(HW, 128)                                  # lane-dense

    tr = _pick_row_tile(nr_pad, sublane_mult, hw_pad, max_block_elems)
    if tr is not None:
        n_hw = 1
        thw = hw_pad
    else:
        # Row block with full HW does not fit: tile spatially (two-pass).
        tr = sublane_mult
        max_thw = max(128, (max_block_elems // tr) // 128 * 128)
        n_hw = ceil(hw_pad / max_thw)
        thw = _round_up(ceil(hw_pad / n_hw), 128)
        hw_pad = thw * n_hw

    x_p = jnp.pad(x.reshape(NR, HW), ((0, nr_pad - NR), (0, hw_pad - HW)))
    gb_p = jnp.pad(gb, ((0, nr_pad - NR), (0, 0)))
    n_r = nr_pad // tr

    if n_hw == 1:
        kernel = functools.partial(_adain_fused_kernel, hw_true=HW,
                                   masked=(hw_pad != HW))
        out_p = pl.pallas_call(
            kernel,
            out_shape=jax.ShapeDtypeStruct((nr_pad, hw_pad), x.dtype),
            grid_spec=pltpu.PrefetchScalarGridSpec(
                num_scalar_prefetch=0,
                grid=(n_r,),
                in_specs=[
                    pl.BlockSpec((tr, 2), lambda r: (r, 0)),         # gamma/beta
                    pl.BlockSpec((tr, hw_pad), lambda r: (r, 0)),    # x
                ],
                out_specs=pl.BlockSpec((tr, hw_pad), lambda r: (r, 0)),
            ),
            compiler_params=pltpu.CompilerParams(
                dimension_semantics=("parallel",)),
            cost_estimate=pl.CostEstimate(
                flops=7 * nr_pad * hw_pad,
                transcendentals=nr_pad,
                bytes_accessed=2 * nr_pad * hw_pad * itemsize + nr_pad * 2 * 4),
        )(gb_p, x_p)
    else:
        # Pass 1: per-row sums -> folded (scale, shift).
        ab = pl.pallas_call(
            functools.partial(_adain_stats_kernel, hw_true=HW),
            out_shape=jax.ShapeDtypeStruct((nr_pad, 2), jnp.float32),
            grid_spec=pltpu.PrefetchScalarGridSpec(
                num_scalar_prefetch=0,
                grid=(n_r, n_hw),
                in_specs=[
                    pl.BlockSpec((tr, 2), lambda r, h: (r, 0)),
                    pl.BlockSpec((tr, thw), lambda r, h: (r, h)),
                ],
                out_specs=pl.BlockSpec((tr, 2), lambda r, h: (r, 0)),
                scratch_shapes=[pltpu.VMEM((tr, 2), jnp.float32)],
            ),
            compiler_params=pltpu.CompilerParams(
                dimension_semantics=("parallel", "arbitrary")),
        )(gb_p, x_p)

        # Pass 2: pure elementwise o = x * a + b.
        out_p = pl.pallas_call(
            _adain_apply_kernel,
            out_shape=jax.ShapeDtypeStruct((nr_pad, hw_pad), x.dtype),
            grid_spec=pltpu.PrefetchScalarGridSpec(
                num_scalar_prefetch=0,
                grid=(n_r, n_hw),
                in_specs=[
                    pl.BlockSpec((tr, 2), lambda r, h: (r, 0)),
                    pl.BlockSpec((tr, thw), lambda r, h: (r, h)),
                ],
                out_specs=pl.BlockSpec((tr, thw), lambda r, h: (r, h)),
            ),
            compiler_params=pltpu.CompilerParams(
                dimension_semantics=("parallel", "parallel")),
        )(ab, x_p)

    return out_p[:NR, :HW].reshape(N, C, H, W)


# --------------------------------------------------------------------------
# Pure-JAX reference mirroring the PyTorch forward.
# --------------------------------------------------------------------------
def adain_ref(x, style, weight, bias):
    N, C, H, W = x.shape
    S = style.shape[1]
    scale = sqrt(2.0 / S)
    y = style @ (weight * scale).T + bias                 # (N, 2C)
    gamma = y[:, :C].reshape(N, C, 1, 1)
    beta = y[:, C:].reshape(N, C, 1, 1)
    mean = jnp.mean(x, axis=(2, 3), keepdims=True)
    var = jnp.var(x, axis=(2, 3), keepdims=True)          # biased, like InstanceNorm2d
    x_norm = (x - mean) / jnp.sqrt(var + EPS)
    return gamma * x_norm + beta


if __name__ == "__main__":
    # Shapes consistent with the module: batch=2, in_channels=4, 16x16, style_dim=8.
    N, C, H, W, S = 2, 4, 16, 16, 8

    key = jax.random.PRNGKey(0)
    k_x, k_s, k_w = jax.random.split(key, 3)

    x = jax.random.normal(k_x, (N, C, H, W), dtype=jnp.float32)
    style = jax.random.normal(k_s, (N, S), dtype=jnp.float32)
    # linear.weight.data.normal_(); bias[:C]=1, bias[C:]=0
    weight = jax.random.normal(k_w, (2 * C, S), dtype=jnp.float32)
    bias = jnp.concatenate([jnp.ones((C,), jnp.float32), jnp.zeros((C,), jnp.float32)])

    out = jax.block_until_ready(adain_pallas(x, style, weight, bias))
    ref = adain_ref(x, style, weight, bias)
    assert out.shape == (N, C, H, W)
    assert jnp.allclose(out, ref, atol=1e-4, rtol=1e-4), "mismatch vs reference"

    # 2) More channels, HW not 128-aligned -> exercises lane padding + masked variance.
    N2, C2, H2, W2 = 2, 16, 8, 8
    k_x2, k_s2, k_w2 = jax.random.split(jax.random.PRNGKey(1), 3)
    x2 = jax.random.normal(k_x2, (N2, C2, H2, W2), dtype=jnp.float32)
    style2 = jax.random.normal(k_s2, (N2, S), dtype=jnp.float32)
    weight2 = jax.random.normal(k_w2, (2 * C2, S), dtype=jnp.float32)
    bias2 = jnp.concatenate([jnp.ones((C2,), jnp.float32), jnp.zeros((C2,), jnp.float32)])
    out2 = jax.block_until_ready(adain_pallas(x2, style2, weight2, bias2))
    ref2 = adain_ref(x2, style2, weight2, bias2)
    assert jnp.allclose(out2, ref2, atol=1e-4, rtol=1e-4), "padded/tiled mismatch"

    # 3) Force the spatially tiled two-pass path with a tiny VMEM budget.
    out3 = jax.block_until_ready(
        adain_pallas(x, style, weight, bias, max_block_elems=8 * 128)
    )
    assert jnp.allclose(out3, ref, atol=1e-4, rtol=1e-4), "hw-tiled mismatch"

    # 4) bf16 storage -> exercises 16-row sublane packing + row padding.
    x4 = x.astype(jnp.bfloat16)
    out4 = jax.block_until_ready(adain_pallas(x4, style, weight, bias))
    ref4 = adain_ref(x4.astype(jnp.float32), style, weight, bias)
    assert jnp.allclose(out4.astype(jnp.float32), ref4, atol=5e-2, rtol=5e-2), "bf16 mismatch"

    print("KERNEL_OK")
</pallas_src>

<mosaic_0001>
module attributes {stable_mosaic.version = 11 : i64} {
  func.func @_adain_fused_kernel(%arg0: i32, %arg1: memref<8x2xf32, #tpu.memory_space<vmem>>, %arg2: memref<8x256xf32, #tpu.memory_space<vmem>>, %arg3: memref<8x256xf32, #tpu.memory_space<vmem>>) attributes {dimension_semantics = [#tpu.dimension_semantics<parallel>], iteration_bounds = array<i64: 1>, scalar_prefetch = 0 : i64, scratch_operands = 0 : i64, tpu.core_type = #tpu.core_type<tc>, window_params = [{transform_indices = @transform_0, window_bounds = array<i64: 8, 2>}, {transform_indices = @transform_1, window_bounds = array<i64: 8, 256>}, {transform_indices = @transform_2, window_bounds = array<i64: 8, 256>}]} {
    %c0 = arith.constant 0 : index
    %c0_0 = arith.constant 0 : index
    %0 = vector.load %arg2[%c0, %c0_0] : memref<8x256xf32, #tpu.memory_space<vmem>>, vector<8x256xf32>
    %cst = arith.constant dense<0.000000e+00> : vector<8xf32>
    %1 = vector.multi_reduction <add>, %0, %cst [1] : vector<8x256xf32> to vector<8xf32>
    %2 = vector.shape_cast %1 : vector<8xf32> to vector<8x1xf32>
    %cst_1 = arith.constant 3.906250e-03 : f32
    %3 = vector.broadcast %cst_1 : f32 to vector<8x1xf32>
    %4 = arith.mulf %2, %3 : vector<8x1xf32>
    %5 = vector.broadcast %4 : vector<8x1xf32> to vector<8x256xf32>
    %6 = arith.subf %0, %5 : vector<8x256xf32>
    %7 = arith.mulf %6, %6 : vector<8x256xf32>
    %cst_2 = arith.constant dense<0.000000e+00> : vector<8xf32>
    %8 = vector.multi_reduction <add>, %7, %cst_2 [1] : vector<8x256xf32> to vector<8xf32>
    %9 = vector.shape_cast %8 : vector<8xf32> to vector<8x1xf32>
    %cst_3 = arith.constant 3.906250e-03 : f32
    %10 = vector.broadcast %cst_3 : f32 to vector<8x1xf32>
    %11 = arith.mulf %9, %10 : vector<8x1xf32>
    %c0_4 = arith.constant 0 : index
    %c0_5 = arith.constant 0 : index
    %12 = vector.load %arg1[%c0_4, %c0_5] : memref<8x2xf32, #tpu.memory_space<vmem>>, vector<8x1xf32>
    %cst_6 = arith.constant 9.99999974E-6 : f32
    %13 = vector.broadcast %cst_6 : f32 to vector<8x1xf32>
    %14 = arith.addf %11, %13 : vector<8x1xf32>
    %15 = math.rsqrt %14 : vector<8x1xf32>
    %16 = arith.mulf %12, %15 : vector<8x1xf32>
    %c0_7 = arith.constant 0 : index
    %c1 = arith.constant 1 : index
    %17 = vector.load %arg1[%c0_7, %c1] : memref<8x2xf32, #tpu.memory_space<vmem>>, vector<8x1xf32>
    %18 = arith.mulf %4, %16 : vector<8x1xf32>
    %19 = arith.subf %17, %18 : vector<8x1xf32>
    %20 = vector.broadcast %16 : vector<8x1xf32> to vector<8x256xf32>
    %21 = arith.mulf %0, %20 : vector<8x256xf32>
    %22 = vector.broadcast %19 : vector<8x1xf32> to vector<8x256xf32>
    %23 = arith.addf %21, %22 : vector<8x256xf32>
    %c0_8 = arith.constant 0 : index
    %c0_9 = arith.constant 0 : index
    %24 = vector.load %arg3[%c0_8, %c0_9] : memref<8x256xf32, #tpu.memory_space<vmem>>, vector<8x256xf32>
    tpu.vector_store %arg3[%c0_8, %c0_9], %23 {strides = array<i32>} : memref<8x256xf32, #tpu.memory_space<vmem>>, vector<8x256xf32>,
    return
  }
  func.func @transform_0(%arg0: i32) -> (i32, i32) {
    %c0_i32 = arith.constant 0 : i32
    %c0_i32_0 = arith.constant 0 : i32
    return %arg0, %c0_i32 : i32, i32
  }
  func.func @transform_1(%arg0: i32) -> (i32, i32) {
    %c0_i32 = arith.constant 0 : i32
    %c0_i32_0 = arith.constant 0 : i32
    return %arg0, %c0_i32 : i32, i32
  }
  func.func @transform_2(%arg0: i32) -> (i32, i32) {
    %c0_i32 = arith.constant 0 : i32
    %c0_i32_0 = arith.constant 0 : i32
    return %arg0, %c0_i32 : i32, i32
  }
}

</mosaic_0001>

<llo_original>
// kernel: tpu_custom_call.1
$region0: #{tpu_custom_call.1}
  #allocation0 [shape = 'u32[]', space=smem, size = 0x4, offset = 0x4, fixed_abs, tag = 'smem constant byte address 0x4 - core index']
  #allocation1 [shape = 'u32[144,128]{1,0:T(1,128)}', space=vmem, size = 0x12000, scoped, tag = 'internal scratch']
  %s0 = inlined_call_operand.vmem [shape: f32[8,2], index: 0, kind: input, shape index: {}]
  %s1 = inlined_call_operand.hbm [shape: f32[8,256], index: 1, kind: input, shape index: {}]
  %s2 = inlined_call_operand.hbm [shape: f32[8,256], index: 2, kind: output, shape index: {}]
  %s3 = sld [smem:[#allocation0]]
  $region22: #{tpu_custom_call.1} parent=0
    _
  %s5 = ssub.s32 1, %s3
  %s6 = scalar_select 0, %s5, %s3
  $region1: #{tpu_custom_call.1} parent=0
    #allocation2 [shape = 'u8[8192]{0}', space=vmem, size = 0x2000, scoped, tag = 'input window, operand 1, single buffered']
    #allocation3 [shape = 's32[1]{0}', space=sflag, size = 0x4, scoped, tag = 'scoped memory for tpu_custom_call.1']
    #allocation4 [shape = 's32[1]{0}', space=sflag, size = 0x4, scoped, tag = 'scoped memory for tpu_custom_call.1']
    #allocation5 [shape = 'u8[8192]{0}', space=vmem, size = 0x2000, scoped, tag = 'output window, operand 0, single buffered']
    %7 = vsyncpa [#allocation3], 0
    %8 = vsyncpa [#allocation4], 0
    // Predicated region
    $region2: #{tpu_custom_call.1} parent=1 // pred_check
      _
    $region3: #{tpu_custom_call.1} parent=1 // pred_check_branch
      %10 = sbr.rel (0) target = $region5
    $region4: #{tpu_custom_call.1} parent=1 // pred_region
      _
    $region5: #{tpu_custom_call.1} parent=1 // pred_fallthru
      _
    // Predicated region
    $region6: #{tpu_custom_call.1} parent=1 // pred_check
      _
    $region7: #{tpu_custom_call.1} parent=1 // pred_check_branch
      %12 = sbr.rel (0) target = $region9
    $region8: #{tpu_custom_call.1} parent=1 // pred_region
      %s14 = ssub.s32 256, 256
      %15 = vsyncadd [#allocation3], %s14
      %s17 = sshll.u32 [#allocation2], 4
      %s18 = int_to_ptr.vmem [resolvable:$true] %s17
      %20 = dma.hbm_to_vmem [thread:$0]  %s1, 256, %s18, [#allocation3]
    $region9: #{tpu_custom_call.1} parent=1 // pred_fallthru
      _
    // Predicated region
    $region10: #{tpu_custom_call.1} parent=1 // pred_check
      _
    $region11: #{tpu_custom_call.1} parent=1 // pred_check_branch
      %22 = sbr.rel (0) target = $region13
    $region12: #{tpu_custom_call.1} parent=1 // pred_region
      %23 = dma.done [#allocation3], 256
    $region13: #{tpu_custom_call.1} parent=1 // pred_fallthru
      _
    %v24 = vld [vmem:[#allocation2] sm:$0xff]
    %v25 = vld [vmem:[#allocation2 + $0x8] sm:$0xff]
    %v26 = vadd.f32 %v24, %v25
    %27 = vadd.xlane.f32.xlu0 %v26
    %v28 = vpop.xlane.xlu0 %27
    %v29 = vmul.f32 %v28, 0.00390625
    %v30 = vsub.f32 %v24, %v29
    %v31 = vsub.f32 %v25, %v29
    %v32 = vmul.f32 %v30, %v30
    %v33 = vmul.f32 %v31, %v31
    %v34 = vadd.f32 %v32, %v33
    %35 = vadd.xlane.f32.xlu0 %v34
    %v36 = vpop.xlane.xlu0 %35
    %v37 = vmul.f32 %v36, 0.00390625
    %v38 = vld [vmem:[%s0] sm:$0xff]
    %v39 = vadd.f32 %v37, 1e-05
    %v40 = vrsqrt.pop %v39
    %v41 = vmul.f32 %v38, %v40
    %v42 = vmul.f32 %v29, %v41
    %44 = vrot.lane.b32.xlu0 %v42, 1
    %v45 = vpop.permute.xlu0 %44
    %v47 = vsub.f32 %v38, %v45
    %49 = vset.pattern.permute.xlu0 0
    %50 = vperm.xlu0 %49, %v41
    %v51 = vpop.permute.xlu0 %50
    %v53 = vmul.f32 %v24, %v51
    %v54 = vmul.f32 %v25, %v51
    %56 = vset.pattern.permute.xlu0 1
    %57 = vperm.xlu0 %56, %v47
    %v58 = vpop.permute.xlu0 %57
    %v60 = vadd.f32 %v53, %v58
    %v61 = vadd.f32 %v54, %v58
    %62 = vst [vmem:[#allocation5] sm:$0xff] %v60
    %63 = vst [vmem:[#allocation5 + $0x8] sm:$0xff] %v61
    // Predicated region
    $region14: #{tpu_custom_call.1} parent=1 // pred_check
      _
    $region15: #{tpu_custom_call.1} parent=1 // pred_check_branch
      %65 = sbr.rel (0) target = $region17
    $region16: #{tpu_custom_call.1} parent=1 // pred_region
      %s67 = ssub.s32 256, 256
      %68 = vsyncadd [#allocation4], %s67
      %s70 = sshll.u32 [#allocation5], 4
      %s71 = int_to_ptr.vmem [resolvable:$true] %s70
      %73 = dma.vmem_to_hbm [thread:$0]  %s71, 256, %s2, [#allocation4]
    $region17: #{tpu_custom_call.1} parent=1 // pred_fallthru
      _
    // Predicated region
    $region18: #{tpu_custom_call.1} parent=1 // pred_check
      _
    $region19: #{tpu_custom_call.1} parent=1 // pred_check_branch
      %75 = sbr.rel (0) target = $region21
    $region20: #{tpu_custom_call.1} parent=1 // pred_region
      %76 = dma.done [#allocation4], 256
    $region21: #{tpu_custom_call.1} parent=1 // pred_fallthru
      _
    %77 = vsyncpa [#allocation3], 1
    %78 = vsyncpa [#allocation4], 1

</llo_original>
